<compile_context>
chip_gen: v6e
topology: v6e:2x2x1
jax: 0.10.0
libtpu: 0.0.40
codegen_flags: <defaults>
</compile_context>

<pallas_src>
import jax
import jax.numpy as jnp
from jax.experimental import pallas as pl
from jax.experimental.pallas import tpu as pltpu


def _round_up(x, m):
    return ((x + m - 1) // m) * m


# ---------------------------------------------------------------------------
# Kernels
# ---------------------------------------------------------------------------

def _fused_linear_kernel(x_ref, w_ref, b_ref, o_ref):
    # Single-block fused head: o = x @ W + b (whole arrays resident in VMEM).
    acc = jnp.dot(x_ref[...], w_ref[...], preferred_element_type=jnp.float32)
    o_ref[...] = (acc + b_ref[...]).astype(o_ref.dtype)


def _fused_linear_tiled_kernel(x_ref, w_ref, b_ref, o_ref, acc_ref):
    # Tiled fused head: accumulate over the reduction grid axis (k, last axis).
    k = pl.program_id(2)

    @pl.when(k == 0)
    def _():
        acc_ref[...] = jnp.zeros_like(acc_ref)

    acc_ref[...] += jnp.dot(x_ref[...], w_ref[...],
                            preferred_element_type=jnp.float32)

    @pl.when(k == pl.num_programs(2) - 1)
    def _():
        o_ref[...] = (acc_ref[...] + b_ref[...]).astype(o_ref.dtype)


# ---------------------------------------------------------------------------
# pallas_call wrappers
# ---------------------------------------------------------------------------

def _fused_linear_single_block(x, w, b2):
    """y = x @ w + b2 with everything in VMEM as a single block (small shapes)."""
    bp, dp = x.shape
    _, np_ = w.shape
    return pl.pallas_call(
        _fused_linear_kernel,
        out_shape=jax.ShapeDtypeStruct((bp, np_), x.dtype),
        in_specs=[
            pl.BlockSpec(memory_space=pltpu.MemorySpace.VMEM),
            pl.BlockSpec(memory_space=pltpu.MemorySpace.VMEM),
            pl.BlockSpec(memory_space=pltpu.MemorySpace.VMEM),
        ],
        out_specs=pl.BlockSpec(memory_space=pltpu.MemorySpace.VMEM),
        cost_estimate=pl.CostEstimate(
            flops=2 * bp * dp * np_,
            transcendentals=0,
            bytes_accessed=4 * (bp * dp + dp * np_ + np_ + bp * np_)),
    )(x, w, b2)


def _fused_linear_tiled(x, w, b2, *, tm, tn, tk):
    """Tiled y = x @ w + b2 with f32 VMEM accumulator (production shapes)."""
    bp, dp = x.shape
    _, np_ = w.shape
    grid = (bp // tm, np_ // tn, dp // tk)
    return pl.pallas_call(
        _fused_linear_tiled_kernel,
        out_shape=jax.ShapeDtypeStruct((bp, np_), x.dtype),
        grid_spec=pltpu.PrefetchScalarGridSpec(
            num_scalar_prefetch=0,
            grid=grid,
            in_specs=[
                pl.BlockSpec((tm, tk), lambda i, j, k: (i, k)),
                pl.BlockSpec((tk, tn), lambda i, j, k: (k, j)),
                pl.BlockSpec((1, tn), lambda i, j, k: (0, j)),
            ],
            out_specs=pl.BlockSpec((tm, tn), lambda i, j, k: (i, j)),
            scratch_shapes=[pltpu.VMEM((tm, tn), jnp.float32)],
        ),
        compiler_params=pltpu.CompilerParams(
            dimension_semantics=("parallel", "parallel", "arbitrary")),
        cost_estimate=pl.CostEstimate(
            flops=2 * bp * dp * np_,
            transcendentals=0,
            bytes_accessed=4 * (bp * dp + dp * np_ + np_ + bp * np_)),
    )(x, w, b2)


# ---------------------------------------------------------------------------
# Module
# ---------------------------------------------------------------------------

class HierarchicalSoftmaxPallas:
    """JAX/Pallas port of the PyTorch HierarchicalSoftmax module.

    All per-branch nn.Linear heads are fused into a single matmul against a
    concatenated, 128-lane-padded weight matrix; per-branch logits are sliced
    out afterwards.  Like the PyTorch module, __call__ returns raw logits.
    """

    def __init__(self, input_dim, tree_structure, key, block_sizes=None):
        self.input_dim = input_dim
        self.tree_structure = tree_structure
        self.block_sizes = block_sizes  # None -> single-block kernel; else (tm, tn, tk)

        if block_sizes is not None:
            tm, tn, tk = block_sizes
            assert tm % 8 == 0 and tn % 128 == 0 and tk % 128 == 0
            self._b_align, self._n_align, self._d_align = tm, tn, tk
        else:
            self._b_align, self._n_align, self._d_align = 8, 128, 1

        self.branch_sizes = [len(branch) for branch in tree_structure]
        self.n_total = sum(self.branch_sizes)
        self.n_pad = _round_up(self.n_total, self._n_align)
        self.d_pad = _round_up(input_dim, self._d_align)

        # nn.Linear-style init per branch, then fuse (pre-transposed to [D, n]).
        bound = 1.0 / (input_dim ** 0.5)
        w_blocks, b_blocks = [], []
        self.branch_params = []  # kept (unpadded) for the reference check
        for i, n_branch in enumerate(self.branch_sizes):
            kw, kb = jax.random.split(jax.random.fold_in(key, i))
            w = jax.random.uniform(
                kw, (n_branch, input_dim), jnp.float32, -bound, bound)
            b = jax.random.uniform(kb, (n_branch,), jnp.float32, -bound, bound)
            w_t = jnp.transpose(w)  # [D, n_branch]
            self.branch_params.append((w_t, b))
            w_blocks.append(w_t)
            b_blocks.append(b)

        w_cat = jnp.concatenate(w_blocks, axis=1)  # [D, n_total]
        b_cat = jnp.concatenate(b_blocks, axis=0)  # [n_total]
        # Zero-pad N to a lane multiple (and D to a tk multiple when tiled) so
        # the kernel reads/writes dense, unmasked vregs.
        w_cat = jnp.pad(w_cat, ((0, self.d_pad - input_dim),
                                (0, self.n_pad - self.n_total)))
        b_cat = jnp.pad(b_cat, (0, self.n_pad - self.n_total))
        self.w_cat = w_cat                          # [d_pad, n_pad]
        self.b_cat = b_cat.reshape(1, self.n_pad)   # [1, n_pad]
        # TODO(synk): for production-sized heads on v6e/v7x store w_cat (and x)
        # in bfloat16 with f32 accumulation; kept f32 here for exact parity.

    def __call__(self, x):
        B, D = x.shape
        assert D == self.input_dim
        b_pad = _round_up(max(B, self._b_align), self._b_align)
        # Pad batch to a sublane multiple (and D to a tk multiple when tiled).
        x_p = jnp.pad(x, ((0, b_pad - B), (0, self.d_pad - D)))

        if self.block_sizes is None:
            y = _fused_linear_single_block(x_p, self.w_cat, self.b_cat)
        else:
            tm, tn, tk = self.block_sizes
            y = _fused_linear_tiled(x_p, self.w_cat, self.b_cat,
                                    tm=tm, tn=tn, tk=tk)

        # Strip padding and split per branch (plain-JAX slicing).
        y = y[:B, : self.n_total]
        outputs = []
        off = 0
        for n_branch in self.branch_sizes:
            outputs.append(y[:, off:off + n_branch])
            off += n_branch
        return outputs


def _reference(x, branch_params):
    return [x @ w_t + b for (w_t, b) in branch_params]


if __name__ == "__main__":
    key = jax.random.PRNGKey(0)
    k_in, k_mod, k_in2, k_mod2 = jax.random.split(key, 4)

    # --- small config (module-scale test): single-block fused kernel --------
    batch, input_dim = 2, 32
    tree_structure = [
        [0, 1, 2, 3],
        [4, 5, 6],
        [7, 8, 9, 10, 11],
    ]
    x = jax.random.normal(k_in, (batch, input_dim), jnp.float32)
    model = HierarchicalSoftmaxPallas(input_dim, tree_structure, k_mod)
    outs = [jax.block_until_ready(o) for o in model(x)]
    refs = _reference(x, model.branch_params)
    for o, r, branch in zip(outs, refs, tree_structure):
        assert o.shape == (batch, len(branch)), (o.shape, len(branch))
        assert jnp.allclose(o, r, atol=1e-5, rtol=1e-5), "small-path mismatch"

    # --- larger config exercising the tiled (gridded) fused kernel ----------
    batch2, input_dim2 = 128, 256
    tree_structure2 = [list(range(s)) for s in (96, 64, 40)]  # n_total = 200
    x2 = jax.random.normal(k_in2, (batch2, input_dim2), jnp.float32)
    model2 = HierarchicalSoftmaxPallas(
        input_dim2, tree_structure2, k_mod2, block_sizes=(64, 128, 128))
    outs2 = [jax.block_until_ready(o) for o in model2(x2)]
    refs2 = _reference(x2, model2.branch_params)
    for o, r, branch in zip(outs2, refs2, tree_structure2):
        assert o.shape == (batch2, len(branch)), (o.shape, len(branch))
        assert jnp.allclose(o, r, atol=1e-4, rtol=1e-4), "tiled-path mismatch"

    print("KERNEL_OK")
</pallas_src>

<mosaic_0001>
module attributes {stable_mosaic.version = 11 : i64} {
  func.func @_fused_linear_kernel(%arg0: memref<8x32xf32, #tpu.memory_space<vmem>>, %arg1: memref<32x128xf32, #tpu.memory_space<vmem>>, %arg2: memref<1x128xf32, #tpu.memory_space<vmem>>, %arg3: memref<8x128xf32, #tpu.memory_space<vmem>>) attributes {dimension_semantics = [], scalar_prefetch = 0 : i64, scratch_operands = 0 : i64, tpu.core_type = #tpu.core_type<tc>} {
    %c0 = arith.constant 0 : index
    %c0_0 = arith.constant 0 : index
    %0 = vector.load %arg0[%c0, %c0_0] : memref<8x32xf32, #tpu.memory_space<vmem>>, vector<8x32xf32>
    %c0_1 = arith.constant 0 : index
    %c0_2 = arith.constant 0 : index
    %1 = vector.load %arg1[%c0_1, %c0_2] : memref<32x128xf32, #tpu.memory_space<vmem>>, vector<32x128xf32>
    %cst = arith.constant dense<0.000000e+00> : vector<8x128xf32>
    %2 = tpu.matmul %0, %1, %cst {dimension_numbers = #tpu.dot_dimension_numbers<[1], [0], [0], [1], [0, 0, 1, 1], [], []>} : vector<8x32xf32>, vector<32x128xf32>, vector<8x128xf32> -> vector<8x128xf32>
    %c0_3 = arith.constant 0 : index
    %c0_4 = arith.constant 0 : index
    %3 = vector.load %arg2[%c0_3, %c0_4] : memref<1x128xf32, #tpu.memory_space<vmem>>, vector<1x128xf32>
    %4 = vector.broadcast %3 : vector<1x128xf32> to vector<8x128xf32>
    %5 = arith.addf %2, %4 : vector<8x128xf32>
    %c0_5 = arith.constant 0 : index
    %c0_6 = arith.constant 0 : index
    %6 = vector.load %arg3[%c0_5, %c0_6] : memref<8x128xf32, #tpu.memory_space<vmem>>, vector<8x128xf32>
    tpu.vector_store %arg3[%c0_5, %c0_6], %5 {strides = array<i32>} : memref<8x128xf32, #tpu.memory_space<vmem>>, vector<8x128xf32>,
    return
  }
}

</mosaic_0001>

<llo_original>
// kernel: tpu_custom_call.1
$region0: #{tpu_custom_call.1}
  #allocation0 [shape = 'u32[]', space=smem, size = 0x4, offset = 0x4, fixed_abs, tag = 'smem constant byte address 0x4 - core index']
  #allocation1 [shape = 'u32[144,128]{1,0:T(1,128)}', space=vmem, size = 0x12000, scoped, tag = 'internal scratch']
  %s0 = inlined_call_operand.hbm [shape: f32[8,32], index: 0, kind: input, shape index: {}]
  %s1 = inlined_call_operand.hbm [shape: f32[32,128], index: 1, kind: input, shape index: {}]
  %s2 = inlined_call_operand.vmem [shape: f32[1,128], index: 2, kind: input, shape index: {}]
  %s3 = inlined_call_operand.hbm [shape: f32[8,128], index: 3, kind: output, shape index: {}]
  %s4 = sld [smem:[#allocation0]]
  $region30: #{tpu_custom_call.1} parent=0
    _
  %s6 = ssub.s32 1, %s4
  %s7 = scalar_select 0, %s6, %s4
  $region1: #{tpu_custom_call.1} parent=0
    #allocation2 [shape = 'u8[4096]{0}', space=vmem, size = 0x1000, scoped, tag = 'input window, operand 0, single buffered']
    #allocation3 [shape = 's32[1]{0}', space=sflag, size = 0x4, scoped, tag = 'scoped memory for tpu_custom_call.1']
    #allocation4 [shape = 's32[1]{0}', space=sflag, size = 0x4, scoped, tag = 'scoped memory for tpu_custom_call.1']
    #allocation5 [shape = 'u8[16384]{0}', space=vmem, size = 0x4000, scoped, tag = 'input window, operand 1, single buffered']
    #allocation6 [shape = 's32[1]{0}', space=sflag, size = 0x4, scoped, tag = 'scoped memory for tpu_custom_call.1']
    #allocation7 [shape = 'u8[4096]{0}', space=vmem, size = 0x1000, scoped, tag = 'output window, operand 0, single buffered']
    %8 = vsyncpa [#allocation3], 0
    %9 = vsyncpa [#allocation6], 0
    %10 = vsyncpa [#allocation4], 0
    // Predicated region
    $region2: #{tpu_custom_call.1} parent=1 // pred_check
      _
    $region3: #{tpu_custom_call.1} parent=1 // pred_check_branch
      %12 = sbr.rel (0) target = $region5
    $region4: #{tpu_custom_call.1} parent=1 // pred_region
      %s14 = ssub.s32 128, 128
      %15 = vsyncadd [#allocation3], %s14
      %s17 = sshll.u32 [#allocation2], 4
      %s18 = int_to_ptr.vmem [resolvable:$true] %s17
      %20 = dma.hbm_to_vmem [thread:$0]  %s0, 128, %s18, [#allocation3]
    $region5: #{tpu_custom_call.1} parent=1 // pred_fallthru
      _
    // Predicated region
    $region6: #{tpu_custom_call.1} parent=1 // pred_check
      _
    $region7: #{tpu_custom_call.1} parent=1 // pred_check_branch
      %22 = sbr.rel (0) target = $region9
    $region8: #{tpu_custom_call.1} parent=1 // pred_region
      %s24 = ssub.s32 512, 512
      %25 = vsyncadd [#allocation6], %s24
      %s26 = sshll.u32 [#allocation5], 4
      %s27 = int_to_ptr.vmem [resolvable:$true] %s26
      %32 = dma.hbm_to_vmem [thread:$0]  %s1, 512, %s27, [#allocation6], 128, 128, 8
    $region9: #{tpu_custom_call.1} parent=1 // pred_fallthru
      _
    // Predicated region
    $region10: #{tpu_custom_call.1} parent=1 // pred_check
      _
    $region11: #{tpu_custom_call.1} parent=1 // pred_check_branch
      %34 = sbr.rel (0) target = $region13
    $region12: #{tpu_custom_call.1} parent=1 // pred_region
      _
    $region13: #{tpu_custom_call.1} parent=1 // pred_fallthru
      _
    // Predicated region
    $region14: #{tpu_custom_call.1} parent=1 // pred_check
      _
    $region15: #{tpu_custom_call.1} parent=1 // pred_check_branch
      %36 = sbr.rel (0) target = $region17
    $region16: #{tpu_custom_call.1} parent=1 // pred_region
      %37 = dma.done [#allocation3], 128
    $region17: #{tpu_custom_call.1} parent=1 // pred_fallthru
      _
    // Predicated region
    $region18: #{tpu_custom_call.1} parent=1 // pred_check
      _
    $region19: #{tpu_custom_call.1} parent=1 // pred_check_branch
      %39 = sbr.rel (0) target = $region21
    $region20: #{tpu_custom_call.1} parent=1 // pred_region
      %40 = dma.done [#allocation6], 512
    $region21: #{tpu_custom_call.1} parent=1 // pred_fallthru
      _
    %v41 = vld [vmem:[#allocation2] sm:$0xff]
    %v42 = vld [vmem:[#allocation5] sm:$0xff]
    %v43 = vld [vmem:[#allocation5 + $0x8] sm:$0xff]
    %v44 = vld [vmem:[#allocation5 + $0x10] sm:$0xff]
    %v45 = vld [vmem:[#allocation5 + $0x18] sm:$0xff]
    %v46 = vld [vmem:[%s2] sm:$0x1]
    %v48 = vlaneseq
    %v49 = vshrl.u32 %v48, 7
    %v50 = vsub.s32 0, %v49
    %v51 = vrot.slane %v46, %v50
    %vm53 = vcmask 261120
    %v55 = vsel %vm53, %v41, 0
    %57 = vmatprep.subr.mxu0 0.0
    %58 = vmatpush1.msra.mxu0 0.0
    %59 = vmatprep.subr.mxu0 0.0
    %60 = vmatpush1.msra.mxu0 0.0
    %61 = vmatprep.subr.mxu0 0.0
    %62 = vmatpush1.msra.mxu0 0.0
    %63 = vmatprep.subr.mxu0 0.0
    %64 = vmatpush1.msra.mxu0 0.0
    %65 = vmatprep.subr.mxu0 0.0
    %66 = vmatpush1.msra.mxu0 0.0
    %67 = vmatprep.subr.mxu0 0.0
    %68 = vmatpush1.msra.mxu0 0.0
    %69 = vmatprep.subr.mxu0 0.0
    %70 = vmatpush1.msra.mxu0 0.0
    %71 = vmatprep.subr.mxu0 0.0
    %72 = vmatpush1.msra.mxu0 0.0
    %73 = vmatprep.subr.mxu0 0.0
    %74 = vmatpush1.msra.mxu0 0.0
    %75 = vmatprep.subr.mxu0 0.0
    %76 = vmatpush1.msra.mxu0 0.0
    %77 = vmatprep.subr.mxu0 0.0
    %78 = vmatpush1.msra.mxu0 0.0
    %79 = vmatprep.subr.mxu0 0.0
    %80 = vmatpush1.msra.mxu0 0.0
    %81 = vmatprep.subr.mxu0 0.0
    %82 = vmatpush1.msra.mxu0 %v45
    %83 = vmatprep.subr.mxu0 0.0
    %84 = vmatpush1.msra.mxu0 %v44
    %85 = vmatprep.subr.mxu0 0.0
    %86 = vmatpush1.msra.mxu0 %v43
    %87 = vmatprep.subr.mxu0 0.0
    %88 = vmatpush1.msra.mxu0 %v42
    %89 = vmatprep.subr.mxu0 0.0
    %90 = vmatpush2.msra.mxu0 0.0
    %91 = vmatprep.subr.mxu0 0.0
    %92 = vmatpush2.msra.mxu0 0.0
    %93 = vmatprep.subr.mxu0 0.0
    %94 = vmatpush2.msra.mxu0 0.0
    %95 = vmatprep.subr.mxu0 0.0
    %96 = vmatpush2.msra.mxu0 0.0
    %97 = vmatprep.subr.mxu0 0.0
    %98 = vmatpush2.msra.mxu0 0.0
    %99 = vmatprep.subr.mxu0 0.0
    %100 = vmatpush2.msra.mxu0 0.0
    %101 = vmatprep.subr.mxu0 0.0
    %102 = vmatpush2.msra.mxu0 0.0
    %103 = vmatprep.subr.mxu0 0.0
    %104 = vmatpush2.msra.mxu0 0.0
    %105 = vmatprep.subr.mxu0 0.0
    %106 = vmatpush2.msra.mxu0 0.0
    %107 = vmatprep.subr.mxu0 0.0
    %108 = vmatpush2.msra.mxu0 0.0
    %109 = vmatprep.subr.mxu0 0.0
    %110 = vmatpush2.msra.mxu0 0.0
    %111 = vmatprep.subr.mxu0 0.0
    %112 = vmatpush2.msra.mxu0 0.0
    %113 = vmatprep.subr.mxu0 0.0
    %114 = vmatpush2.msra.mxu0 0.0
    %115 = vmatprep.subr.mxu0 0.0
    %116 = vmatpush2.msra.mxu0 0.0
    %117 = vmatprep.subr.mxu0 0.0
    %118 = vmatpush2.msra.mxu0 0.0
    %119 = vmatprep.subr.mxu0 0.0
    %120 = vmatpush2.msra.mxu0 0.0
    %121 = vmatprep.mubr.f32.mxu0 0.0
    %122 = vmatmul.mubr.f32.gmra.mxu0 %v55
    %v123 = vpop.f32.mrf.mxu0
    %v124 = vadd.f32 %v51, %v123
    %v125 = vpop.f32.mrf.mxu0
    %126 = vdwg.mxu0
    %127 = vst [vmem:[#allocation7] sm:$0xff] %v124
    // Predicated region
    $region22: #{tpu_custom_call.1} parent=1 // pred_check
      _
    $region23: #{tpu_custom_call.1} parent=1 // pred_check_branch
      %129 = sbr.rel (0) target = $region25
    $region24: #{tpu_custom_call.1} parent=1 // pred_region
      %s131 = ssub.s32 128, 128
      %132 = vsyncadd [#allocation4], %s131
      %s134 = sshll.u32 [#allocation7], 4
      %s135 = int_to_ptr.vmem [resolvable:$true] %s134
      %137 = dma.vmem_to_hbm [thread:$0]  %s135, 128, %s3, [#allocation4]
    $region25: #{tpu_custom_call.1} parent=1 // pred_fallthru
      _
    // Predicated region
    $region26: #{tpu_custom_call.1} parent=1 // pred_check
      _
    $region27: #{tpu_custom_call.1} parent=1 // pred_check_branch
      %139 = sbr.rel (0) target = $region29
    $region28: #{tpu_custom_call.1} parent=1 // pred_region
      %140 = dma.done [#allocation4], 128
    $region29: #{tpu_custom_call.1} parent=1 // pred_fallthru
      _
    %141 = vsyncpa [#allocation3], 1
    %142 = vsyncpa [#allocation6], 1
    %143 = vsyncpa [#allocation4], 1

</llo_original>
